<compile_context>
chip_gen: v7x
topology: tpu7x:2x2x1
jax: 0.10.0
libtpu: 0.0.40
codegen_flags: <defaults>
</compile_context>

<pallas_src>
import jax
import jax.numpy as jnp
from jax.experimental import pallas as pl
from jax.experimental.pallas import tpu as pltpu

IN_F, H1, H2, OUT_F = 140, 128, 64, 8


def mlp_kernel(x_ref, w1_ref, b1_ref, w2_ref, b2_ref, w3_ref, b3_ref, o_ref):
    # Layer 1: (TB,140) @ (140,128) + (1,128) -> ReLU   (bf16 in, f32 accum)
    h1 = jnp.dot(x_ref[...], w1_ref[...], preferred_element_type=jnp.float32)
    h1 = jnp.maximum(h1 + b1_ref[...], 0.0)
    # Layer 2: (TB,128) @ (128,64) + (1,64) -> ReLU
    h2 = jnp.dot(h1.astype(w2_ref.dtype), w2_ref[...],
                 preferred_element_type=jnp.float32)
    h2 = jnp.maximum(h2 + b2_ref[...], 0.0)
    # Layer 3: (TB,64) @ (64,8) + (1,8)   (no activation)
    out = jnp.dot(h2.astype(w3_ref.dtype), w3_ref[...],
                  preferred_element_type=jnp.float32) + b3_ref[...]
    o_ref[...] = out.astype(o_ref.dtype)


def _round_up(n, m):
    return ((n + m - 1) // m) * m


def mlp_forward(x, w1, b1, w2, b2, w3, b3, *, block_b=1024,
                compute_dtype=jnp.bfloat16):
    # x: (..., 140) -> flatten leading dims, matching torch `x.view(-1, 140)`
    x2d = x.reshape(-1, IN_F)
    B = x2d.shape[0]

    # Tile the batch dim: TB = 1024 plateau, or the (8-aligned) batch for small B.
    tb = min(block_b, max(8, _round_up(B, 8)))
    b_pad = _round_up(B, tb)
    if b_pad != B:
        x2d = jnp.pad(x2d, ((0, b_pad - B), (0, 0)))
    num_blocks = b_pad // tb

    # Stream activations / weights in bf16; keep biases + output f32.
    x2d = x2d.astype(compute_dtype)
    w1c, w2c, w3c = (w.astype(compute_dtype) for w in (w1, w2, w3))
    b1c, b2c, b3c = (b.astype(jnp.float32) for b in (b1, b2, b3))

    const2d = lambda shape: pl.BlockSpec(shape, lambda i: (0, 0))

    itemsize = jnp.dtype(compute_dtype).itemsize
    weight_bytes = sum(int(w.size) * itemsize for w in (w1c, w2c, w3c)) + \
        sum(int(b.size) * 4 for b in (b1c, b2c, b3c))
    cost = pl.CostEstimate(
        flops=2 * b_pad * (IN_F * H1 + H1 * H2 + H2 * OUT_F),
        bytes_accessed=b_pad * IN_F * itemsize + b_pad * OUT_F * 4 + weight_bytes,
        transcendentals=0,
    )

    out = pl.pallas_call(
        mlp_kernel,
        out_shape=jax.ShapeDtypeStruct((b_pad, OUT_F), jnp.float32),
        grid=(num_blocks,),
        in_specs=[
            pl.BlockSpec((tb, IN_F), lambda i: (i, 0)),   # x: streamed per block
            const2d(w1c.shape), const2d(b1c.shape),       # params: VMEM-resident
            const2d(w2c.shape), const2d(b2c.shape),
            const2d(w3c.shape), const2d(b3c.shape),
        ],
        out_specs=pl.BlockSpec((tb, OUT_F), lambda i: (i, 0)),
        compiler_params=pltpu.CompilerParams(
            dimension_semantics=("parallel",),            # shard batch across TCs (v7x)
        ),
        cost_estimate=cost,
    )(x2d, w1c, b1c, w2c, b2c, w3c, b3c)

    return out[:B]


def init_params(key):
    # Deterministic init mimicking nn.Linear's uniform(-1/sqrt(fan_in), 1/sqrt(fan_in)).
    # Weights are stored as (in_features, out_features) for direct x @ W.
    ks = jax.random.split(key, 6)

    def lin(kw, kb, fan_in, fan_out):
        bound = 1.0 / jnp.sqrt(jnp.float32(fan_in))
        w = jax.random.uniform(kw, (fan_in, fan_out), jnp.float32, -bound, bound)
        b = jax.random.uniform(kb, (1, fan_out), jnp.float32, -bound, bound)
        return w, b

    w1, b1 = lin(ks[0], ks[1], IN_F, H1)
    w2, b2 = lin(ks[2], ks[3], H1, H2)
    w3, b3 = lin(ks[4], ks[5], H2, OUT_F)
    return w1, b1, w2, b2, w3, b3


def ref_forward(x, w1, b1, w2, b2, w3, b3, compute_dtype=jnp.bfloat16):
    # Plain-JAX reference following the same bf16-stream / f32-accumulate path.
    xc = x.reshape(-1, IN_F).astype(compute_dtype)
    h1 = jnp.dot(xc, w1.astype(compute_dtype),
                 preferred_element_type=jnp.float32) + b1
    h1 = jnp.maximum(h1, 0.0)
    h2 = jnp.dot(h1.astype(compute_dtype), w2.astype(compute_dtype),
                 preferred_element_type=jnp.float32) + b2
    h2 = jnp.maximum(h2, 0.0)
    return jnp.dot(h2.astype(compute_dtype), w3.astype(compute_dtype),
                   preferred_element_type=jnp.float32) + b3


if __name__ == "__main__":
    key = jax.random.PRNGKey(0)
    k_x, k_x2, k_p = jax.random.split(key, 3)
    params = init_params(k_p)

    # Small batch (exercises the B < TB / padded-single-block path).
    x_small = jax.random.normal(k_x, (4, IN_F), dtype=jnp.float32)
    out_small = jax.block_until_ready(mlp_forward(x_small, *params))
    ref_small = ref_forward(x_small, *params)
    assert out_small.shape == (4, OUT_F)
    assert jnp.allclose(out_small, ref_small, atol=2e-2, rtol=2e-2)

    # Larger, non-multiple-of-TB batch (exercises multi-step grid + pad slicing).
    x_big = jax.random.normal(k_x2, (2500, IN_F), dtype=jnp.float32)
    out_big = jax.block_until_ready(mlp_forward(x_big, *params))
    ref_big = ref_forward(x_big, *params)
    assert out_big.shape == (2500, OUT_F)
    assert jnp.allclose(out_big, ref_big, atol=2e-2, rtol=2e-2)

    print("KERNEL_OK")
</pallas_src>

<mosaic_0001>
module attributes {stable_mosaic.version = 11 : i64} {
  func.func @mlp_kernel(%arg0: i32, %arg1: memref<8x140xbf16, #tpu.memory_space<vmem>>, %arg2: memref<140x128xbf16, #tpu.memory_space<vmem>>, %arg3: memref<1x128xf32, #tpu.memory_space<vmem>>, %arg4: memref<128x64xbf16, #tpu.memory_space<vmem>>, %arg5: memref<1x64xf32, #tpu.memory_space<vmem>>, %arg6: memref<64x8xbf16, #tpu.memory_space<vmem>>, %arg7: memref<1x8xf32, #tpu.memory_space<vmem>>, %arg8: memref<8x8xf32, #tpu.memory_space<vmem>>) attributes {dimension_semantics = [#tpu.dimension_semantics<parallel>], iteration_bounds = array<i64: 1>, scalar_prefetch = 0 : i64, scratch_operands = 0 : i64, tpu.core_type = #tpu.core_type<tc>, window_params = [{transform_indices = @transform_0, window_bounds = array<i64: 8, 140>}, {pipeline_mode = #tpu.pipeline_mode<synchronous>, transform_indices = @transform_1, window_bounds = array<i64: 140, 128>}, {pipeline_mode = #tpu.pipeline_mode<synchronous>, transform_indices = @transform_2, window_bounds = array<i64: 1, 128>}, {pipeline_mode = #tpu.pipeline_mode<synchronous>, transform_indices = @transform_3, window_bounds = array<i64: 128, 64>}, {pipeline_mode = #tpu.pipeline_mode<synchronous>, transform_indices = @transform_4, window_bounds = array<i64: 1, 64>}, {pipeline_mode = #tpu.pipeline_mode<synchronous>, transform_indices = @transform_5, window_bounds = array<i64: 64, 8>}, {pipeline_mode = #tpu.pipeline_mode<synchronous>, transform_indices = @transform_6, window_bounds = array<i64: 1, 8>}, {transform_indices = @transform_7, window_bounds = array<i64: 8, 8>}]} {
    %c0 = arith.constant 0 : index
    %c0_0 = arith.constant 0 : index
    %0 = vector.load %arg1[%c0, %c0_0] : memref<8x140xbf16, #tpu.memory_space<vmem>>, vector<8x140xbf16>
    %c0_1 = arith.constant 0 : index
    %c0_2 = arith.constant 0 : index
    %1 = vector.load %arg2[%c0_1, %c0_2] : memref<140x128xbf16, #tpu.memory_space<vmem>>, vector<140x128xbf16>
    %cst = arith.constant dense<0.000000e+00> : vector<8x128xf32>
    %2 = tpu.matmul %0, %1, %cst {dimension_numbers = #tpu.dot_dimension_numbers<[1], [0], [0], [1], [0, 0, 1, 1], [], []>} : vector<8x140xbf16>, vector<140x128xbf16>, vector<8x128xf32> -> vector<8x128xf32>
    %c0_3 = arith.constant 0 : index
    %c0_4 = arith.constant 0 : index
    %3 = vector.load %arg3[%c0_3, %c0_4] : memref<1x128xf32, #tpu.memory_space<vmem>>, vector<1x128xf32>
    %4 = vector.broadcast %3 : vector<1x128xf32> to vector<8x128xf32>
    %5 = arith.addf %2, %4 : vector<8x128xf32>
    %cst_5 = arith.constant 0.000000e+00 : f32
    %6 = vector.broadcast %cst_5 : f32 to vector<8x128xf32>
    %7 = arith.maximumf %5, %6 : vector<8x128xf32>
    %8 = arith.truncf %7 : vector<8x128xf32> to vector<8x128xbf16>
    %c0_6 = arith.constant 0 : index
    %c0_7 = arith.constant 0 : index
    %9 = vector.load %arg4[%c0_6, %c0_7] : memref<128x64xbf16, #tpu.memory_space<vmem>>, vector<128x64xbf16>
    %cst_8 = arith.constant dense<0.000000e+00> : vector<8x64xf32>
    %10 = tpu.matmul %8, %9, %cst_8 {dimension_numbers = #tpu.dot_dimension_numbers<[1], [0], [0], [1], [0, 0, 1, 1], [], []>} : vector<8x128xbf16>, vector<128x64xbf16>, vector<8x64xf32> -> vector<8x64xf32>
    %c0_9 = arith.constant 0 : index
    %c0_10 = arith.constant 0 : index
    %11 = vector.load %arg5[%c0_9, %c0_10] : memref<1x64xf32, #tpu.memory_space<vmem>>, vector<1x64xf32>
    %12 = vector.broadcast %11 : vector<1x64xf32> to vector<8x64xf32>
    %13 = arith.addf %10, %12 : vector<8x64xf32>
    %cst_11 = arith.constant 0.000000e+00 : f32
    %14 = vector.broadcast %cst_11 : f32 to vector<8x64xf32>
    %15 = arith.maximumf %13, %14 : vector<8x64xf32>
    %16 = arith.truncf %15 : vector<8x64xf32> to vector<8x64xbf16>
    %c0_12 = arith.constant 0 : index
    %c0_13 = arith.constant 0 : index
    %17 = vector.load %arg6[%c0_12, %c0_13] : memref<64x8xbf16, #tpu.memory_space<vmem>>, vector<64x8xbf16>
    %cst_14 = arith.constant dense<0.000000e+00> : vector<8x8xf32>
    %18 = tpu.matmul %16, %17, %cst_14 {dimension_numbers = #tpu.dot_dimension_numbers<[1], [0], [0], [1], [0, 0, 1, 1], [], []>} : vector<8x64xbf16>, vector<64x8xbf16>, vector<8x8xf32> -> vector<8x8xf32>
    %c0_15 = arith.constant 0 : index
    %c0_16 = arith.constant 0 : index
    %19 = vector.load %arg7[%c0_15, %c0_16] : memref<1x8xf32, #tpu.memory_space<vmem>>, vector<1x8xf32>
    %20 = vector.broadcast %19 : vector<1x8xf32> to vector<8x8xf32>
    %21 = arith.addf %18, %20 : vector<8x8xf32>
    %c0_17 = arith.constant 0 : index
    %c0_18 = arith.constant 0 : index
    %22 = vector.load %arg8[%c0_17, %c0_18] : memref<8x8xf32, #tpu.memory_space<vmem>>, vector<8x8xf32>
    tpu.vector_store %arg8[%c0_17, %c0_18], %21 {strides = array<i32>} : memref<8x8xf32, #tpu.memory_space<vmem>>, vector<8x8xf32>,
    return
  }
  func.func @transform_0(%arg0: i32) -> (i32, i32) {
    %c0_i32 = arith.constant 0 : i32
    %c0_i32_0 = arith.constant 0 : i32
    return %arg0, %c0_i32 : i32, i32
  }
  func.func @transform_1(%arg0: i32) -> (i32, i32) {
    %c0_i32 = arith.constant 0 : i32
    %c0_i32_0 = arith.constant 0 : i32
    %c0_i32_1 = arith.constant 0 : i32
    return %c0_i32, %c0_i32_0 : i32, i32
  }
  func.func @transform_2(%arg0: i32) -> (i32, i32) {
    %c0_i32 = arith.constant 0 : i32
    %c0_i32_0 = arith.constant 0 : i32
    %c0_i32_1 = arith.constant 0 : i32
    return %c0_i32, %c0_i32_0 : i32, i32
  }
  func.func @transform_3(%arg0: i32) -> (i32, i32) {
    %c0_i32 = arith.constant 0 : i32
    %c0_i32_0 = arith.constant 0 : i32
    %c0_i32_1 = arith.constant 0 : i32
    return %c0_i32, %c0_i32_0 : i32, i32
  }
  func.func @transform_4(%arg0: i32) -> (i32, i32) {
    %c0_i32 = arith.constant 0 : i32
    %c0_i32_0 = arith.constant 0 : i32
    %c0_i32_1 = arith.constant 0 : i32
    return %c0_i32, %c0_i32_0 : i32, i32
  }
  func.func @transform_5(%arg0: i32) -> (i32, i32) {
    %c0_i32 = arith.constant 0 : i32
    %c0_i32_0 = arith.constant 0 : i32
    %c0_i32_1 = arith.constant 0 : i32
    return %c0_i32, %c0_i32_0 : i32, i32
  }
  func.func @transform_6(%arg0: i32) -> (i32, i32) {
    %c0_i32 = arith.constant 0 : i32
    %c0_i32_0 = arith.constant 0 : i32
    %c0_i32_1 = arith.constant 0 : i32
    return %c0_i32, %c0_i32_0 : i32, i32
  }
  func.func @transform_7(%arg0: i32) -> (i32, i32) {
    %c0_i32 = arith.constant 0 : i32
    %c0_i32_0 = arith.constant 0 : i32
    return %arg0, %c0_i32 : i32, i32
  }
}

</mosaic_0001>

<llo_original>
// kernel: tpu_custom_call.1
$region0: #{tpu_custom_call.1}
  #allocation0 [shape = 'u32[]', space=smem, size = 0x4, offset = 0x4, fixed_abs, tag = 'smem constant byte address 0x4 - core index']
  #allocation1 [shape = 'u32[144,128]{1,0:T(1,128)}', space=vmem, size = 0x12000, scoped, tag = 'internal scratch']
  %s0 = inlined_call_operand.vmem [shape: bf16[8,140], index: 0, kind: input, shape index: {}]
  %s1 = inlined_call_operand.vmem [shape: bf16[140,128], index: 1, kind: input, shape index: {}]
  %s2 = inlined_call_operand.vmem [shape: f32[1,128], index: 2, kind: input, shape index: {}]
  %s3 = inlined_call_operand.vmem [shape: bf16[128,64], index: 3, kind: input, shape index: {}]
  %s4 = inlined_call_operand.vmem [shape: f32[1,64], index: 4, kind: input, shape index: {}]
  %s5 = inlined_call_operand.vmem [shape: bf16[64,8], index: 5, kind: input, shape index: {}]
  %s6 = inlined_call_operand.vmem [shape: f32[1,8], index: 6, kind: input, shape index: {}]
  %s7 = inlined_call_operand.hbm [shape: f32[8,8], index: 7, kind: output, shape index: {}]
  %s8 = sld [smem:[#allocation0]]
  $region38: #{tpu_custom_call.1} parent=0
    _
  %s10 = ssub.s32 1, %s8
  %s11 = scalar_select 0, %s10, %s8
  $region1: #{tpu_custom_call.1} parent=0
    #allocation2 [shape = 'u8[4096]{0}', space=vmem, size = 0x1000, scoped, tag = 'output window, operand 0, single buffered']
    #allocation3 [shape = 's32[1]{0}', space=sflag, size = 0x4, scoped, tag = 'scoped memory for tpu_custom_call.1']
    %12 = vsyncpa [#allocation3], 0
    // Predicated region
    $region2: #{tpu_custom_call.1} parent=1 // pred_check
      _
    $region3: #{tpu_custom_call.1} parent=1 // pred_check_branch
      %14 = sbr.rel (0) target = $region5
    $region4: #{tpu_custom_call.1} parent=1 // pred_region
      _
    $region5: #{tpu_custom_call.1} parent=1 // pred_fallthru
      _
    // Predicated region
    $region6: #{tpu_custom_call.1} parent=1 // pred_check
      _
    $region7: #{tpu_custom_call.1} parent=1 // pred_check_branch
      %16 = sbr.rel (0) target = $region9
    $region8: #{tpu_custom_call.1} parent=1 // pred_region
      _
    $region9: #{tpu_custom_call.1} parent=1 // pred_fallthru
      _
    // Predicated region
    $region10: #{tpu_custom_call.1} parent=1 // pred_check
      _
    $region11: #{tpu_custom_call.1} parent=1 // pred_check_branch
      %18 = sbr.rel (0) target = $region13
    $region12: #{tpu_custom_call.1} parent=1 // pred_region
      _
    $region13: #{tpu_custom_call.1} parent=1 // pred_fallthru
      _
    // Predicated region
    $region14: #{tpu_custom_call.1} parent=1 // pred_check
      _
    $region15: #{tpu_custom_call.1} parent=1 // pred_check_branch
      %20 = sbr.rel (0) target = $region17
    $region16: #{tpu_custom_call.1} parent=1 // pred_region
      _
    $region17: #{tpu_custom_call.1} parent=1 // pred_fallthru
      _
    // Predicated region
    $region18: #{tpu_custom_call.1} parent=1 // pred_check
      _
    $region19: #{tpu_custom_call.1} parent=1 // pred_check_branch
      %22 = sbr.rel (0) target = $region21
    $region20: #{tpu_custom_call.1} parent=1 // pred_region
      _
    $region21: #{tpu_custom_call.1} parent=1 // pred_fallthru
      _
    // Predicated region
    $region22: #{tpu_custom_call.1} parent=1 // pred_check
      _
    $region23: #{tpu_custom_call.1} parent=1 // pred_check_branch
      %24 = sbr.rel (0) target = $region25
    $region24: #{tpu_custom_call.1} parent=1 // pred_region
      _
    $region25: #{tpu_custom_call.1} parent=1 // pred_fallthru
      _
    // Predicated region
    $region26: #{tpu_custom_call.1} parent=1 // pred_check
      _
    $region27: #{tpu_custom_call.1} parent=1 // pred_check_branch
      %26 = sbr.rel (0) target = $region29
    $region28: #{tpu_custom_call.1} parent=1 // pred_region
      _
    $region29: #{tpu_custom_call.1} parent=1 // pred_fallthru
      _
    %v28 = vld [vmem:[%s0] sm:$0xff]
    %v29 = vld [vmem:[%s1] sm:$0xf]
    %v30 = vld [vmem:[%s1 + $0x4] sm:$0xf]
    %v31 = vld [vmem:[%s1 + $0x8] sm:$0xf]
    %v32 = vld [vmem:[%s1 + $0xc] sm:$0xf]
    %v33 = vld [vmem:[%s1 + $0x10] sm:$0xf]
    %v34 = vld [vmem:[%s1 + $0x14] sm:$0xf]
    %v35 = vld [vmem:[%s1 + $0x18] sm:$0xf]
    %v36 = vld [vmem:[%s1 + $0x1c] sm:$0xf]
    %v37 = vld [vmem:[%s1 + $0x20] sm:$0xf]
    %v38 = vld [vmem:[%s1 + $0x24] sm:$0xf]
    %v39 = vld [vmem:[%s1 + $0x28] sm:$0xf]
    %v40 = vld [vmem:[%s1 + $0x2c] sm:$0xf]
    %v41 = vld [vmem:[%s1 + $0x30] sm:$0xf]
    %v42 = vld [vmem:[%s1 + $0x34] sm:$0xf]
    %v43 = vld [vmem:[%s1 + $0x38] sm:$0xf]
    %v44 = vld [vmem:[%s1 + $0x3c] sm:$0xf]
    %v45 = vld [vmem:[%s1 + $0x40] sm:$0xf]
    %v46 = vld [vmem:[%s1 + $0x44] sm:$0x3]
    %v47 = vld [vmem:[%s2] sm:$0x1]
    %v49 = vlaneseq
    %v50 = vshrl.u32 %v49, 7
    %v51 = vsub.s32 0, %v50
    %v52 = vrot.slane %v47, %v51
    %v55 = vunpack.c.l.b16 %v28
    %v56 = vunpack.c.h.b16 %v28
    %v57 = vpack.c.b16 %v55, %v55
    %v58 = vpack.c.b16 %v56, %v56
    %v78 = vunpack.c.l.b16 %v29
    %v79 = vunpack.c.l.b16 %v30
    %v80 = vunpack.c.l.b16 %v31
    %v81 = vunpack.c.l.b16 %v32
    %v82 = vunpack.c.l.b16 %v33
    %v83 = vunpack.c.l.b16 %v34
    %v84 = vunpack.c.l.b16 %v35
    %v85 = vunpack.c.l.b16 %v36
    %v86 = vunpack.c.l.b16 %v37
    %v87 = vunpack.c.l.b16 %v38
    %v88 = vunpack.c.l.b16 %v39
    %v89 = vunpack.c.l.b16 %v40
    %v90 = vunpack.c.l.b16 %v41
    %v91 = vunpack.c.l.b16 %v42
    %v92 = vunpack.c.l.b16 %v43
    %v93 = vunpack.c.l.b16 %v44
    %v94 = vunpack.c.l.b16 %v45
    %v95 = vunpack.c.l.b16 %v46
    %v96 = vpack.c.b16 %v79, %v78
    %v97 = vpack.c.b16 %v81, %v80
    %v98 = vpack.c.b16 %v83, %v82
    %v99 = vpack.c.b16 %v85, %v84
    %v100 = vpack.c.b16 %v87, %v86
    %v101 = vpack.c.b16 %v89, %v88
    %v102 = vpack.c.b16 %v91, %v90
    %v103 = vpack.c.b16 %v93, %v92
    %v104 = vpack.c.b16 %v95, %v94
    %vm113 = vcmask 97280
    %v115 = vsel %vm113, %v58, 0
    %vm117 = vcmask 1045504
    %v119 = vsel %vm117, %v104, 0
    %121 = vmatprep.subr.bf16.mxu0 0
    %122 = vmatpush1.bf16.msra.mxu0 %v96
    %123 = vmatprep.subr.bf16.mxu0 0
    %124 = vmatpush1.bf16.msra.mxu0 %v97
    %125 = vmatprep.subr.bf16.mxu0 0
    %126 = vmatpush1.bf16.msra.mxu0 %v98
    %127 = vmatprep.subr.bf16.mxu0 0
    %128 = vmatpush1.bf16.msra.mxu0 %v99
    %129 = vmatprep.subr.bf16.mxu0 0
    %130 = vmatpush1.bf16.msra.mxu0 %v100
    %131 = vmatprep.subr.bf16.mxu0 0
    %132 = vmatpush1.bf16.msra.mxu0 %v101
    %133 = vmatprep.subr.bf16.mxu0 0
    %134 = vmatpush1.bf16.msra.mxu0 %v102
    %135 = vmatprep.subr.bf16.mxu0 0
    %136 = vmatpush1.bf16.msra.mxu0 %v103
    %137 = vmatprep.subr.bf16.mxu0 0
    %138 = vmatpush1.bf16.msra.mxu0 %v119
    %139 = vmatprep.subr.bf16.mxu0 0
    %140 = vmatpush1.bf16.msra.mxu0 0
    %141 = vmatprep.subr.bf16.mxu0 0
    %142 = vmatpush1.bf16.msra.mxu0 0
    %143 = vmatprep.subr.bf16.mxu0 0
    %144 = vmatpush1.bf16.msra.mxu0 0
    %145 = vmatprep.subr.bf16.mxu0 0
    %146 = vmatpush1.bf16.msra.mxu0 0
    %147 = vmatprep.subr.bf16.mxu0 0
    %148 = vmatpush1.bf16.msra.mxu0 0
    %149 = vmatprep.subr.bf16.mxu0 0
    %150 = vmatpush1.bf16.msra.mxu0 0
    %151 = vmatprep.subr.bf16.mxu0 0
    %152 = vmatpush1.bf16.msra.mxu0 0
    %153 = vmatprep.mubr.bf16.mxu0 %v115
    %154 = vmatmul.mubr.bf16.gmra.mrb[0].mxu0 %v57
    %v155 = vpop.f32.mrb[0].mxu0
    %v156 = vadd.f32 %v52, %v155
    %v157 = vpop.f32.mrb[0].mxu0
    %v158 = vpop.f32.mrb[0].mxu0
    %v159 = vpop.f32.mrb[0].mxu0
    %160 = vdwg.mxu0
    %v161 = vmax.f32 %v156, 0.0
    %v162 = vpack.c.bf16 %v161, %v161
    %v163 = vld [vmem:[%s3] sm:$0xf]
    %v164 = vld [vmem:[%s3 + $0x4] sm:$0xf]
    %v165 = vld [vmem:[%s3 + $0x8] sm:$0xf]
    %v166 = vld [vmem:[%s3 + $0xc] sm:$0xf]
    %v167 = vld [vmem:[%s3 + $0x10] sm:$0xf]
    %v168 = vld [vmem:[%s3 + $0x14] sm:$0xf]
    %v169 = vld [vmem:[%s3 + $0x18] sm:$0xf]
    %v170 = vld [vmem:[%s3 + $0x1c] sm:$0xf]
    %v171 = vld [vmem:[%s3 + $0x20] sm:$0xf]
    %v172 = vld [vmem:[%s3 + $0x24] sm:$0xf]
    %v173 = vld [vmem:[%s3 + $0x28] sm:$0xf]
    %v174 = vld [vmem:[%s3 + $0x2c] sm:$0xf]
    %v175 = vld [vmem:[%s3 + $0x30] sm:$0xf]
    %v176 = vld [vmem:[%s3 + $0x34] sm:$0xf]
    %v177 = vld [vmem:[%s3 + $0x38] sm:$0xf]
    %v178 = vld [vmem:[%s3 + $0x3c] sm:$0xf]
    %v179 = vld [vmem:[%s4] sm:$0x1]
    %v181 = vlaneseq
    %v182 = vshrl.u32 %v181, 7
    %v183 = vsub.s32 0, %v182
    %v184 = vrot.slane %v179, %v183
    %v202 = vunpack.c.l.b16 %v163
    %v203 = vunpack.c.l.b16 %v164
    %v204 = vunpack.c.l.b16 %v165
    %v205 = vunpack.c.l.b16 %v166
    %v206 = vunpack.c.l.b16 %v167
    %v207 = vunpack.c.l.b16 %v168
    %v208 = vunpack.c.l.b16 %v169
    %v209 = vunpack.c.l.b16 %v170
    %v210 = vunpack.c.l.b16 %v171
    %v211 = vunpack.c.l.b16 %v172
    %v212 = vunpack.c.l.b16 %v173
    %v213 = vunpack.c.l.b16 %v174
    %v214 = vunpack.c.l.b16 %v175
    %v215 = vunpack.c.l.b16 %v176
    %v216 = vunpack.c.l.b16 %v177
    %v217 = vunpack.c.l.b16 %v178
    %v218 = vpack.c.b16 %v203, %v202
    %v219 = vpack.c.b16 %v205, %v204
    %v220 = vpack.c.b16 %v207, %v206
    %v221 = vpack.c.b16 %v209, %v208
    %v222 = vpack.c.b16 %v211, %v210
    %v223 = vpack.c.b16 %v213, %v212
    %v224 = vpack.c.b16 %v215, %v214
    %v225 = vpack.c.b16 %v217, %v216
    %234 = vmatprep.subr.bf16.mxu0 0
    %235 = vmatpush1.bf16.msra.mxu0 %v218
    %236 = vmatprep.subr.bf16.mxu0 0
    %237 = vmatpush1.bf16.msra.mxu0 %v219
    %238 = vmatprep.subr.bf16.mxu0 0
    %239 = vmatpush1.bf16.msra.mxu0 %v220
    %240 = vmatprep.subr.bf16.mxu0 0
    %241 = vmatpush1.bf16.msra.mxu0 %v221
    %242 = vmatprep.subr.bf16.mxu0 0
    %243 = vmatpush1.bf16.msra.mxu0 %v222
    %244 = vmatprep.subr.bf16.mxu0 0
    %245 = vmatpush1.bf16.msra.mxu0 %v223
    %246 = vmatprep.subr.bf16.mxu0 0
    %247 = vmatpush1.bf16.msra.mxu0 %v224
    %248 = vmatprep.subr.bf16.mxu0 0
    %249 = vmatpush1.bf16.msra.mxu0 %v225
    %250 = vmatprep.subr.bf16.mxu0 0
    %251 = vmatpush1.bf16.msra.mxu0 0
    %252 = vmatprep.subr.bf16.mxu0 0
    %253 = vmatpush1.bf16.msra.mxu0 0
    %254 = vmatprep.subr.bf16.mxu0 0
    %255 = vmatpush1.bf16.msra.mxu0 0
    %256 = vmatprep.subr.bf16.mxu0 0
    %257 = vmatpush1.bf16.msra.mxu0 0
    %258 = vmatprep.subr.bf16.mxu0 0
    %259 = vmatpush1.bf16.msra.mxu0 0
    %260 = vmatprep.subr.bf16.mxu0 0
    %261 = vmatpush1.bf16.msra.mxu0 0
    %262 = vmatprep.subr.bf16.mxu0 0
    %263 = vmatpush1.bf16.msra.mxu0 0
    %264 = vmatprep.subr.bf16.mxu0 0
    %265 = vmatpush1.bf16.msra.mxu0 0
    %266 = vmatprep.mubr.bf16.mxu0 0
    %267 = vmatmul.mubr.bf16.gmra.mrb[0].mxu0 %v162
    %v268 = vpop.f32.mrb[0].mxu0
    %v269 = vadd.f32 %v184, %v268
    %v270 = vpop.f32.mrb[0].mxu0
    %v271 = vpop.f32.mrb[0].mxu0
    %v272 = vpop.f32.mrb[0].mxu0
    %273 = vdwg.mxu0
    %v274 = vmax.f32 %v269, 0.0
    %v275 = vpack.c.bf16 %v274, %v274
    %v276 = vld [vmem:[%s5] sm:$0xf]
    %v277 = vld [vmem:[%s5 + $0x4] sm:$0xf]
    %v278 = vld [vmem:[%s5 + $0x8] sm:$0xf]
    %v279 = vld [vmem:[%s5 + $0xc] sm:$0xf]
    %v280 = vld [vmem:[%s5 + $0x10] sm:$0xf]
    %v281 = vld [vmem:[%s5 + $0x14] sm:$0xf]
    %v282 = vld [vmem:[%s5 + $0x18] sm:$0xf]
    %v283 = vld [vmem:[%s5 + $0x1c] sm:$0xf]
    %v284 = vld [vmem:[%s6] sm:$0x1]
    %v286 = vlaneseq
    %v287 = vshrl.u32 %v286, 7
    %v288 = vsub.s32 0, %v287
    %v289 = vrot.slane %v284, %v288
    %v299 = vunpack.c.l.b16 %v276
    %v300 = vunpack.c.l.b16 %v277
    %v301 = vunpack.c.l.b16 %v278
    %v302 = vunpack.c.l.b16 %v279
    %v303 = vunpack.c.l.b16 %v280
    %v304 = vunpack.c.l.b16 %v281
    %v305 = vunpack.c.l.b16 %v282
    %v306 = vunpack.c.l.b16 %v283
    %v307 = vpack.c.b16 %v300, %v299
    %v308 = vpack.c.b16 %v302, %v301
    %v309 = vpack.c.b16 %v304, %v303
    %v310 = vpack.c.b16 %v306, %v305
    %vm315 = vcmask 523264
    %v317 = vsel %vm315, %v275, 0
    %319 = vmatprep.subr.bf16.mxu0 0
    %320 = vmatpush1.bf16.msra.mxu0 %v307
    %321 = vmatprep.subr.bf16.mxu0 0
    %322 = vmatpush1.bf16.msra.mxu0 %v308
    %323 = vmatprep.subr.bf16.mxu0 0
    %324 = vmatpush1.bf16.msra.mxu0 %v309
    %325 = vmatprep.subr.bf16.mxu0 0
    %326 = vmatpush1.bf16.msra.mxu0 %v310
    %327 = vmatprep.subr.bf16.mxu0 0
    %328 = vmatpush1.bf16.msra.mxu0 0
    %329 = vmatprep.subr.bf16.mxu0 0
    %330 = vmatpush1.bf16.msra.mxu0 0
    %331 = vmatprep.subr.bf16.mxu0 0
    %332 = vmatpush1.bf16.msra.mxu0 0
    %333 = vmatprep.subr.bf16.mxu0 0
    %334 = vmatpush1.bf16.msra.mxu0 0
    %335 = vmatprep.subr.bf16.mxu0 0
    %336 = vmatpush1.bf16.msra.mxu0 0
    %337 = vmatprep.subr.bf16.mxu0 0
    %338 = vmatpush1.bf16.msra.mxu0 0
    %339 = vmatprep.subr.bf16.mxu0 0
    %340 = vmatpush1.bf16.msra.mxu0 0
    %341 = vmatprep.subr.bf16.mxu0 0
    %342 = vmatpush1.bf16.msra.mxu0 0
    %343 = vmatprep.subr.bf16.mxu0 0
    %344 = vmatpush1.bf16.msra.mxu0 0
    %345 = vmatprep.subr.bf16.mxu0 0
    %346 = vmatpush1.bf16.msra.mxu0 0
    %347 = vmatprep.subr.bf16.mxu0 0
    %348 = vmatpush1.bf16.msra.mxu0 0
    %349 = vmatprep.subr.bf16.mxu0 0
    %350 = vmatpush1.bf16.msra.mxu0 0
    %351 = vmatprep.mubr.bf16.mxu0 0
    %352 = vmatmul.mubr.bf16.gmra.mrb[0].mxu0 %v317
    %v353 = vpop.f32.mrb[0].mxu0
    %v354 = vadd.f32 %v289, %v353
    %v355 = vpop.f32.mrb[0].mxu0
    %v356 = vpop.f32.mrb[0].mxu0
    %v357 = vpop.f32.mrb[0].mxu0
    %358 = vdwg.mxu0
    %vm359 = vcmask 64512
    %360 = vst.msk [vmem:[#allocation2] sm:$0xff] %vm359, %v354
    // Predicated region
    $region30: #{tpu_custom_call.1} parent=1 // pred_check
      _
    $region31: #{tpu_custom_call.1} parent=1 // pred_check_branch
      %362 = sbr.rel (0) target = $region33
    $region32: #{tpu_custom_call.1} parent=1 // pred_region
      %s364 = ssub.s32 128, 128
      %365 = vsyncadd [#allocation3], %s364
      %s367 = sshll.u32 [#allocation2], 4
      %s368 = int_to_ptr.vmem [resolvable:$true] %s367
      %370 = dma.vmem_to_hbm [thread:$0]  %s368, 128, %s7, [#allocation3]
    $region33: #{tpu_custom_call.1} parent=1 // pred_fallthru
      _
    // Predicated region
    $region34: #{tpu_custom_call.1} parent=1 // pred_check
      _
    $region35: #{tpu_custom_call.1} parent=1 // pred_check_branch
      %372 = sbr.rel (0) target = $region37
    $region36: #{tpu_custom_call.1} parent=1 // pred_region
      %373 = dma.done [#allocation3], 128
    $region37: #{tpu_custom_call.1} parent=1 // pred_fallthru
      _
    %374 = vsyncpa [#allocation3], 1

</llo_original>
